<compile_context>
chip_gen: v7x
topology: tpu7x:2x2x1
jax: 0.10.0
libtpu: 0.0.40
codegen_flags: <defaults>
</compile_context>

<pallas_src>
import jax
import jax.numpy as jnp
from jax import lax
from jax.experimental import pallas as pl
from jax.experimental.pallas import tpu as pltpu


def _largest_divisor_leq(n, cap):
    cap = int(max(1, min(n, cap)))
    for d in range(cap, 0, -1):
        if n % d == 0:
            return d
    return 1


def _make_mlp_kernel(nb, tl, chunk):
    n_chunks = tl // chunk

    def kernel(x_ref, w1_ref, b1_ref, w2_ref, b2_ref, o_ref):
        # x_ref:  (nb, Cin,  tl)   lane-dense pixels of nb images
        # w1_ref: (Hid, Cin)       b1_ref: (Hid, 1)
        # w2_ref: (Cout, Hid)      b2_ref: (Cout, 1)
        # o_ref:  (nb, Cout, tl)
        w1 = w1_ref[...]
        b1 = b1_ref[...]
        w2 = w2_ref[...]
        b2 = b2_ref[...]

        def process(b, start):
            xb = x_ref[b, :, pl.ds(start, chunk)]                        # (Cin, chunk)
            h = jnp.dot(w1, xb, preferred_element_type=jnp.float32) + b1
            h = jnp.maximum(h, 0.0)                                      # ReLU
            # Keep f32 activation; only cast for the MXU operand when weights demand it.
            h_mx = h if w2.dtype == jnp.float32 else h.astype(w2.dtype)
            y = jnp.dot(w2, h_mx, preferred_element_type=jnp.float32) + b2
            o_ref[b, :, pl.ds(start, chunk)] = y.astype(o_ref.dtype)

        if n_chunks == 1:
            for b in range(nb):                 # static unroll over images in this block
                process(b, 0)
        else:
            def body(c, carry):
                start = pl.multiple_of(c * chunk, chunk)
                for b in range(nb):
                    process(b, start)
                return carry
            lax.fori_loop(0, n_chunks, body, 0,
                          unroll=True if n_chunks <= 8 else 4)

    return kernel


def mlp_pallas(x_nchw, w1, b1, w2, b2, *,
               target_step_bytes=2 << 20,      # ~2 MiB HBM traffic per grid step
               vmem_budget_bytes=12 << 20):    # fits v5e 16 MiB scoped / v7x 32 MiB
    """x_nchw: (N, Cin, H, W); w1: (Hid, Cin); b1: (Hid,); w2: (Cout, Hid); b2: (Cout,)."""
    N, Cin, H, W = x_nchw.shape
    Hid = w1.shape[0]
    Cout = w2.shape[0]
    HW = H * W

    # NCHW already has HW contiguous per channel -> pure reshape, no HBM transpose.
    x3d = x_nchw.reshape(N, Cin, HW)

    # Keep lane width a multiple of 128 so stores use the unmasked vst path.
    HW_pad = -(-HW // 128) * 128
    if HW_pad != HW:
        x3d = jnp.pad(x3d, ((0, 0), (0, 0), (0, HW_pad - HW)))

    itemsize = x3d.dtype.itemsize

    # Per-lane costs: HBM IO, and VMEM working set (double-buffered x + out plus
    # the f32 intermediates h and y that BlockSpec does not account for).
    io_per_lane = (Cin + Cout) * itemsize
    vmem_per_lane = 2 * 2 * (Cin + Cout) * itemsize + (Hid + Cout) * 4
    lanes_cap = min(target_step_bytes // io_per_lane,
                    vmem_budget_bytes // vmem_per_lane)
    lanes_cap = max(128, (lanes_cap // 128) * 128)

    if HW_pad <= lanes_cap:
        # Whole image per step -> one contiguous Cout*HW output DMA per image.
        # Block the batch axis to fatten steps, keeping >=2 steps for v7x's 2 TCs.
        tl = HW_pad
        nb_want = max(1, lanes_cap // HW_pad)
        if N >= 2:
            nb_want = min(nb_want, max(1, N // 2))
        nb = _largest_divisor_leq(N, nb_want)
    else:
        # One image exceeds the budget: tile the lane axis with a big divisor tile.
        nb = 1
        tl = _largest_divisor_leq(HW_pad // 128, lanes_cap // 128) * 128

    # In-kernel sub-chunking bounds vreg pressure for very wide tiles.
    chunk = tl if tl <= 2048 else _largest_divisor_leq(tl // 128, 2048 // 128) * 128

    grid = (N // nb, HW_pad // tl)

    b1_c = b1.reshape(Hid, 1)
    b2_c = b2.reshape(Cout, 1)

    flops = 2 * N * HW_pad * (Cin * Hid + Hid * Cout)
    bytes_accessed = (N * HW_pad * (Cin + Cout) * itemsize
                      + (Hid * Cin + Hid) * w1.dtype.itemsize
                      + (Cout * Hid + Cout) * w2.dtype.itemsize)

    out3d = pl.pallas_call(
        _make_mlp_kernel(nb, tl, chunk),
        out_shape=jax.ShapeDtypeStruct((N, Cout, HW_pad), x_nchw.dtype),
        grid_spec=pl.GridSpec(
            grid=grid,
            in_specs=[
                # x: batch-blocked, full channel extent, lane tile.
                pl.BlockSpec((nb, Cin, tl), lambda i, j: (i, 0, j)),
                # Weights / biases: tiny, fully resident across all grid steps.
                pl.BlockSpec((Hid, Cin), lambda i, j: (0, 0)),
                pl.BlockSpec((Hid, 1), lambda i, j: (0, 0)),
                pl.BlockSpec((Cout, Hid), lambda i, j: (0, 0)),
                pl.BlockSpec((Cout, 1), lambda i, j: (0, 0)),
            ],
            out_specs=pl.BlockSpec((nb, Cout, tl), lambda i, j: (i, 0, j)),
        ),
        compiler_params=pltpu.CompilerParams(
            dimension_semantics=("parallel", "parallel"),
            vmem_limit_bytes=32 * 1024 * 1024),
        cost_estimate=pl.CostEstimate(
            flops=flops, transcendentals=0, bytes_accessed=bytes_accessed),
    )(x3d, w1, b1_c, w2, b2_c)

    if HW_pad != HW:
        out3d = out3d[:, :, :HW]
    # (N, Cout, HW) -> (N, Cout, H, W): pure reshape, no transpose.
    return out3d.reshape(N, Cout, H, W)


def mlp_reference(x_nchw, w1, b1, w2, b2):
    # Pure-JAX reference of Conv2d(1x1) -> ReLU -> Conv2d(1x1).
    h = jnp.einsum("nchw,oc->nohw", x_nchw, w1) + b1[None, :, None, None]
    h = jnp.maximum(h, 0.0)
    y = jnp.einsum("nchw,oc->nohw", h, w2) + b2[None, :, None, None]
    return y


if __name__ == "__main__":
    # Module config: in_features=4, hidden_features=8, out_features=4
    N, Cin, H, W = 2, 4, 16, 16
    Hid, Cout = 8, 4

    key = jax.random.PRNGKey(0)
    k_x, k_w1, k_b1, k_w2, k_b2 = jax.random.split(key, 5)

    x = jax.random.normal(k_x, (N, Cin, H, W), dtype=jnp.float32)
    # Conv2d(in, hid, 1) weight (hid, in, 1, 1) -> squeezed (hid, in); bias (hid,)
    w1 = jax.random.normal(k_w1, (Hid, Cin), dtype=jnp.float32) * 0.1
    b1 = jax.random.normal(k_b1, (Hid,), dtype=jnp.float32) * 0.1
    # Conv2d(hid, out, 1) weight (out, hid, 1, 1) -> squeezed (out, hid); bias (out,)
    w2 = jax.random.normal(k_w2, (Cout, Hid), dtype=jnp.float32) * 0.1
    b2 = jax.random.normal(k_b2, (Cout,), dtype=jnp.float32) * 0.1

    out = mlp_pallas(x, w1, b1, w2, b2)
    out = jax.block_until_ready(out)

    ref = mlp_reference(x, w1, b1, w2, b2)
    assert out.shape == (N, Cout, H, W), out.shape
    assert jnp.allclose(out, ref, atol=1e-5, rtol=1e-5), "mismatch vs reference"

    print("KERNEL_OK")
</pallas_src>

<mosaic_0001>
module attributes {stable_mosaic.version = 11 : i64} {
  func.func @kernel(%arg0: i32, %arg1: i32, %arg2: memref<1x4x256xf32, #tpu.memory_space<vmem>>, %arg3: memref<8x4xf32, #tpu.memory_space<vmem>>, %arg4: memref<8x1xf32, #tpu.memory_space<vmem>>, %arg5: memref<4x8xf32, #tpu.memory_space<vmem>>, %arg6: memref<4x1xf32, #tpu.memory_space<vmem>>, %arg7: memref<1x4x256xf32, #tpu.memory_space<vmem>>) attributes {dimension_semantics = [#tpu.dimension_semantics<parallel>, #tpu.dimension_semantics<parallel>], iteration_bounds = array<i64: 2, 1>, scalar_prefetch = 0 : i64, scratch_operands = 0 : i64, tpu.core_type = #tpu.core_type<tc>, window_params = [{transform_indices = @transform_0, window_bounds = array<i64: 1, 4, 256>}, {pipeline_mode = #tpu.pipeline_mode<synchronous>, transform_indices = @transform_1, window_bounds = array<i64: 8, 4>}, {pipeline_mode = #tpu.pipeline_mode<synchronous>, transform_indices = @transform_2, window_bounds = array<i64: 8, 1>}, {pipeline_mode = #tpu.pipeline_mode<synchronous>, transform_indices = @transform_3, window_bounds = array<i64: 4, 8>}, {pipeline_mode = #tpu.pipeline_mode<synchronous>, transform_indices = @transform_4, window_bounds = array<i64: 4, 1>}, {transform_indices = @transform_5, window_bounds = array<i64: 1, 4, 256>}]} {
    %c0 = arith.constant 0 : index
    %c0_0 = arith.constant 0 : index
    %0 = vector.load %arg3[%c0, %c0_0] : memref<8x4xf32, #tpu.memory_space<vmem>>, vector<8x4xf32>
    %c0_1 = arith.constant 0 : index
    %c0_2 = arith.constant 0 : index
    %1 = vector.load %arg4[%c0_1, %c0_2] : memref<8x1xf32, #tpu.memory_space<vmem>>, vector<8x1xf32>
    %c0_3 = arith.constant 0 : index
    %c0_4 = arith.constant 0 : index
    %2 = vector.load %arg5[%c0_3, %c0_4] : memref<4x8xf32, #tpu.memory_space<vmem>>, vector<4x8xf32>
    %c0_5 = arith.constant 0 : index
    %c0_6 = arith.constant 0 : index
    %3 = vector.load %arg6[%c0_5, %c0_6] : memref<4x1xf32, #tpu.memory_space<vmem>>, vector<4x1xf32>
    %c0_7 = arith.constant 0 : index
    %c0_8 = arith.constant 0 : index
    %c0_9 = arith.constant 0 : index
    %4 = vector.load %arg2[%c0_7, %c0_8, %c0_9] : memref<1x4x256xf32, #tpu.memory_space<vmem>>, vector<1x4x256xf32>
    %5 = vector.shape_cast %4 : vector<1x4x256xf32> to vector<4x256xf32>
    %cst = arith.constant dense<0.000000e+00> : vector<8x256xf32>
    %6 = tpu.matmul %0, %5, %cst {dimension_numbers = #tpu.dot_dimension_numbers<[1], [0], [0], [1], [0, 0, 1, 1], [], []>} : vector<8x4xf32>, vector<4x256xf32>, vector<8x256xf32> -> vector<8x256xf32>
    %7 = vector.broadcast %1 : vector<8x1xf32> to vector<8x256xf32>
    %8 = arith.addf %6, %7 : vector<8x256xf32>
    %cst_10 = arith.constant 0.000000e+00 : f32
    %9 = vector.broadcast %cst_10 : f32 to vector<8x256xf32>
    %10 = arith.maximumf %8, %9 : vector<8x256xf32>
    %cst_11 = arith.constant dense<0.000000e+00> : vector<4x256xf32>
    %11 = tpu.matmul %2, %10, %cst_11 {dimension_numbers = #tpu.dot_dimension_numbers<[1], [0], [0], [1], [0, 0, 1, 1], [], []>} : vector<4x8xf32>, vector<8x256xf32>, vector<4x256xf32> -> vector<4x256xf32>
    %12 = vector.broadcast %3 : vector<4x1xf32> to vector<4x256xf32>
    %13 = arith.addf %11, %12 : vector<4x256xf32>
    %c0_12 = arith.constant 0 : index
    %c0_13 = arith.constant 0 : index
    %c0_14 = arith.constant 0 : index
    %14 = vector.load %arg7[%c0_12, %c0_13, %c0_14] : memref<1x4x256xf32, #tpu.memory_space<vmem>>, vector<1x4x256xf32>
    %15 = vector.shape_cast %14 : vector<1x4x256xf32> to vector<4x256xf32>
    %16 = vector.shape_cast %13 : vector<4x256xf32> to vector<1x4x256xf32>
    tpu.vector_store %arg7[%c0_12, %c0_13, %c0_14], %16 {strides = array<i32>} : memref<1x4x256xf32, #tpu.memory_space<vmem>>, vector<1x4x256xf32>,
    return
  }
  func.func @transform_0(%arg0: i32, %arg1: i32) -> (i32, i32, i32) {
    %c0_i32 = arith.constant 0 : i32
    %c0_i32_0 = arith.constant 0 : i32
    return %arg0, %c0_i32, %arg1 : i32, i32, i32
  }
  func.func @transform_1(%arg0: i32, %arg1: i32) -> (i32, i32) {
    %c0_i32 = arith.constant 0 : i32
    %c0_i32_0 = arith.constant 0 : i32
    %c0_i32_1 = arith.constant 0 : i32
    return %c0_i32, %c0_i32_0 : i32, i32
  }
  func.func @transform_2(%arg0: i32, %arg1: i32) -> (i32, i32) {
    %c0_i32 = arith.constant 0 : i32
    %c0_i32_0 = arith.constant 0 : i32
    %c0_i32_1 = arith.constant 0 : i32
    return %c0_i32, %c0_i32_0 : i32, i32
  }
  func.func @transform_3(%arg0: i32, %arg1: i32) -> (i32, i32) {
    %c0_i32 = arith.constant 0 : i32
    %c0_i32_0 = arith.constant 0 : i32
    %c0_i32_1 = arith.constant 0 : i32
    return %c0_i32, %c0_i32_0 : i32, i32
  }
  func.func @transform_4(%arg0: i32, %arg1: i32) -> (i32, i32) {
    %c0_i32 = arith.constant 0 : i32
    %c0_i32_0 = arith.constant 0 : i32
    %c0_i32_1 = arith.constant 0 : i32
    return %c0_i32, %c0_i32_0 : i32, i32
  }
  func.func @transform_5(%arg0: i32, %arg1: i32) -> (i32, i32, i32) {
    %c0_i32 = arith.constant 0 : i32
    %c0_i32_0 = arith.constant 0 : i32
    return %arg0, %c0_i32, %arg1 : i32, i32, i32
  }
}

</mosaic_0001>

<llo_original>
// kernel: tpu_custom_call.1
$region0: #{tpu_custom_call.1}
  #allocation0 [shape = 'u32[]', space=smem, size = 0x4, offset = 0x4, fixed_abs, tag = 'smem constant byte address 0x4 - core index']
  #allocation1 [shape = 'u32[144,128]{1,0:T(1,128)}', space=vmem, size = 0x12000, scoped, tag = 'internal scratch']
  %s0 = inlined_call_operand.vmem [shape: f32[2,4,256], index: 0, kind: input, shape index: {}]
  %s1 = inlined_call_operand.vmem [shape: f32[8,4], index: 1, kind: input, shape index: {}]
  %s2 = inlined_call_operand.vmem [shape: f32[8,1], index: 2, kind: input, shape index: {}]
  %s3 = inlined_call_operand.vmem [shape: f32[4,8], index: 3, kind: input, shape index: {}]
  %s4 = inlined_call_operand.vmem [shape: f32[4,1], index: 4, kind: input, shape index: {}]
  %s5 = inlined_call_operand.hbm [shape: f32[2,4,256], index: 5, kind: output, shape index: {}]
  %s6 = sld [smem:[#allocation0]]
  $region53: #{tpu_custom_call.1} parent=0
    _
  %s8 = ssub.s32 1, %s6
  %s9 = scalar_select 0, %s8, %s6
  $region1: #{tpu_custom_call.1} parent=0
    #allocation2 [shape = 'u8[8192]{0}', space=vmem, size = 0x2000, scoped, tag = 'output window, operand 0']
    #allocation3 [shape = 's32[2]{0}', space=sflag, size = 0x8, scoped, tag = 'scoped memory for tpu_custom_call.1']
    %10 = vsyncpa [#allocation3], 0
    %s11 = scalar_lea.sflag [#allocation3], 1
    %12 = vsyncpa %s11, 0
    loop: start=0, step=1, limit=4
    $region2: #{tpu_custom_call.1} parent=1 // loop_pre_header
      _
    $region3: #{tpu_custom_call.1} parent=1 // loop_header
      %s14 = sphi 0, %s18
      %p15 = scmp.ge.s32.totalorder %s14, 4
      %s21 = sphi 0, %s33
      %s22 = sphi 0, %s29
      %s23 = sphi 0, %s21
      %s24 = sphi 0, %s22
      %s25 = sphi 0, %s23
      %s26 = sphi 0, %s24
      %s38 = sphi 0, %s40
      %s41 = sphi 0, %s38
      %s42 = sphi 0, %s41
      %s58 = sphi 0, %s42
      %s62 = sphi 0, %s62
      %s64 = sphi 0, %s62
      %s65 = sphi 0, %s64
      %s79 = sphi 0, %s65
      %s83 = sphi 0, %s83
      %s85 = sphi 0, %s83
      %s86 = sphi 0, %s85
      %s100 = sphi 0, %s86
      %s104 = sphi 0, %s104
      %s106 = sphi 0, %s104
      %s107 = sphi 0, %s106
      %s121 = sphi 0, %s107
      %s125 = sphi 0, %s125
      %s127 = sphi 0, %s125
      %s128 = sphi 0, %s127
      %s142 = sphi 0, %s128
      %s150 = sphi 0, %s152
      %s153 = sphi 0, %s150
      %s154 = sphi 0, %s153
      %s170 = sphi 0, %s154
    $region4: #{tpu_custom_call.1} parent=1 // loop_header_branch
      %17 = sbr.rel (%p15) target = $region8
    $region5: #{tpu_custom_call.1} parent=1 // loop_body
      %s19 = ssub.s32 %s14, 1
      %s20 = ssub.s32 %s14, 2
      %s27 = sadd.s32 1, %s22
      %p28 = scmp.ge.s32.totalorder %s27, 1
      %s29 = scalar_select %p28, 0, %s27
      %s30 = sadd.s32 1, %s21
      %s31 = scalar_select %p28, %s30, %s21
      %p32 = scmp.ge.s32.totalorder %s31, 2
      %s33 = scalar_select %p32, 0, %s31
      %s34 = ssub.s32 %s21, %s33
      %s35 = ssub.s32 %s22, %s29
      %s36 = sor.u32 %s34, %s35
      %p37 = scmp.eq.s32.totalorder %s36, 0
      %s39 = sadd.s32 %s38, 1
      %s40 = scalar_select %p37, %s38, %s39
      %p43 = pneg %p37
      %p44 = scmp.eq.s32.totalorder %s14, 1
      %p45 = por %p43, %p44
      %p46 = scmp.ne.s32.totalorder %s38, %s41
      %p47 = scmp.eq.s32.totalorder %s14, 0
      %p48 = por %p46, %p47
      %p49 = scmp.ne.s32.totalorder %s38, %s41
      %p50 = scmp.eq.s32.totalorder %s19, 1
      %p51 = por %p49, %p50
      %p52 = scmp.ne.s32.totalorder %s41, %s42
      %p53 = scmp.eq.s32.totalorder %s19, 0
      %p54 = por %p52, %p53
      %p55 = scmp.ne.s32.totalorder %s41, %s42
      %p56 = scmp.eq.s32.totalorder %s20, 1
      %p57 = por %p55, %p56
      %p59 = scmp.ne.s32.totalorder %s42, %s58
      %p60 = scmp.eq.s32.totalorder %s20, 0
      %p61 = por %p59, %p60
      %s63 = sadd.s32 %s62, 1
      %p66 = scmp.eq.s32.totalorder %s14, 1
      %p67 = scmp.ne.s32.totalorder %s62, %s64
      %p68 = scmp.eq.s32.totalorder %s14, 0
      %p69 = por %p67, %p68
      %p70 = scmp.ne.s32.totalorder %s62, %s64
      %p71 = scmp.eq.s32.totalorder %s19, 1
      %p72 = por %p70, %p71
      %p73 = scmp.ne.s32.totalorder %s64, %s65
      %p74 = scmp.eq.s32.totalorder %s19, 0
      %p75 = por %p73, %p74
      %p76 = scmp.ne.s32.totalorder %s64, %s65
      %p77 = scmp.eq.s32.totalorder %s20, 1
      %p78 = por %p76, %p77
      %p80 = scmp.ne.s32.totalorder %s65, %s79
      %p81 = scmp.eq.s32.totalorder %s20, 0
      %p82 = por %p80, %p81
      %s84 = sadd.s32 %s83, 1
      %p87 = scmp.eq.s32.totalorder %s14, 1
      %p88 = scmp.ne.s32.totalorder %s83, %s85
      %p89 = scmp.eq.s32.totalorder %s14, 0
      %p90 = por %p88, %p89
      %p91 = scmp.ne.s32.totalorder %s83, %s85
      %p92 = scmp.eq.s32.totalorder %s19, 1
      %p93 = por %p91, %p92
      %p94 = scmp.ne.s32.totalorder %s85, %s86
      %p95 = scmp.eq.s32.totalorder %s19, 0
      %p96 = por %p94, %p95
      %p97 = scmp.ne.s32.totalorder %s85, %s86
      %p98 = scmp.eq.s32.totalorder %s20, 1
      %p99 = por %p97, %p98
      %p101 = scmp.ne.s32.totalorder %s86, %s100
      %p102 = scmp.eq.s32.totalorder %s20, 0
      %p103 = por %p101, %p102
      %s105 = sadd.s32 %s104, 1
      %p108 = scmp.eq.s32.totalorder %s14, 1
      %p109 = scmp.ne.s32.totalorder %s104, %s106
      %p110 = scmp.eq.s32.totalorder %s14, 0
      %p111 = por %p109, %p110
      %p112 = scmp.ne.s32.totalorder %s104, %s106
      %p113 = scmp.eq.s32.totalorder %s19, 1
      %p114 = por %p112, %p113
      %p115 = scmp.ne.s32.totalorder %s106, %s107
      %p116 = scmp.eq.s32.totalorder %s19, 0
      %p117 = por %p115, %p116
      %p118 = scmp.ne.s32.totalorder %s106, %s107
      %p119 = scmp.eq.s32.totalorder %s20, 1
      %p120 = por %p118, %p119
      %p122 = scmp.ne.s32.totalorder %s107, %s121
      %p123 = scmp.eq.s32.totalorder %s20, 0
      %p124 = por %p122, %p123
      %s126 = sadd.s32 %s125, 1
      %p129 = scmp.eq.s32.totalorder %s14, 1
      %p130 = scmp.ne.s32.totalorder %s125, %s127
      %p131 = scmp.eq.s32.totalorder %s14, 0
      %p132 = por %p130, %p131
      %p133 = scmp.ne.s32.totalorder %s125, %s127
      %p134 = scmp.eq.s32.totalorder %s19, 1
      %p135 = por %p133, %p134
      %p136 = scmp.ne.s32.totalorder %s127, %s128
      %p137 = scmp.eq.s32.totalorder %s19, 0
      %p138 = por %p136, %p137
      %p139 = scmp.ne.s32.totalorder %s127, %s128
      %p140 = scmp.eq.s32.totalorder %s20, 1
      %p141 = por %p139, %p140
      %p143 = scmp.ne.s32.totalorder %s128, %s142
      %p144 = scmp.eq.s32.totalorder %s20, 0
      %p145 = por %p143, %p144
      %s146 = ssub.s32 %s21, %s33
      %s147 = ssub.s32 %s22, %s29
      %s148 = sor.u32 %s146, %s147
      %p149 = scmp.eq.s32.totalorder %s148, 0
      %s151 = sadd.s32 %s150, 1
      %s152 = scalar_select %p149, %s150, %s151
      %p155 = pneg %p149
      %p156 = scmp.eq.s32.totalorder %s14, 1
      %p157 = por %p155, %p156
      %p158 = scmp.ne.s32.totalorder %s150, %s153
      %p159 = scmp.eq.s32.totalorder %s14, 0
      %p160 = por %p158, %p159
      %p161 = scmp.ne.s32.totalorder %s150, %s153
      %p162 = scmp.eq.s32.totalorder %s19, 1
      %p163 = por %p161, %p162
      %p164 = scmp.ne.s32.totalorder %s153, %s154
      %p165 = scmp.eq.s32.totalorder %s19, 0
      %p166 = por %p164, %p165
      %p167 = scmp.ne.s32.totalorder %s153, %s154
      %p168 = scmp.eq.s32.totalorder %s20, 1
      %p169 = por %p167, %p168
      %p171 = scmp.ne.s32.totalorder %s154, %s170
      %p172 = scmp.eq.s32.totalorder %s20, 0
      %p173 = por %p171, %p172
      %p174 = scmp.le.s32.totalorder 1, %s14
      %p175 = scmp.lt.s32.totalorder %s14, 3
      %p176 = pnand %p174, %p175
      %p177 = pneg %p176
      // Predicated region
      $region9: #{tpu_custom_call.1} parent=5 // pred_check
        _
      $region10: #{tpu_custom_call.1} parent=5 // pred_check_branch
        %179 = sbr.rel (%p176) target = $region12
      $region11: #{tpu_custom_call.1} parent=5 // pred_region
        %s180 = ssub.s32 %s14, 1
        // Predicated region
        $region13: #{tpu_custom_call.1} parent=11 // pred_check
          %p181 = pneg %p75
        $region14: #{tpu_custom_call.1} parent=11 // pred_check_branch
          %183 = sbr.rel (%p181) target = $region16
        $region15: #{tpu_custom_call.1} parent=11 // pred_region
          _
        $region16: #{tpu_custom_call.1} parent=11 // pred_fallthru
          _
        // Predicated region
        $region17: #{tpu_custom_call.1} parent=11 // pred_check
          %p184 = pneg %p96
        $region18: #{tpu_custom_call.1} parent=11 // pred_check_branch
          %186 = sbr.rel (%p184) target = $region20
        $region19: #{tpu_custom_call.1} parent=11 // pred_region
          _
        $region20: #{tpu_custom_call.1} parent=11 // pred_fallthru
          _
        // Predicated region
        $region21: #{tpu_custom_call.1} parent=11 // pred_check
          %p187 = pneg %p117
        $region22: #{tpu_custom_call.1} parent=11 // pred_check_branch
          %189 = sbr.rel (%p187) target = $region24
        $region23: #{tpu_custom_call.1} parent=11 // pred_region
          _
        $region24: #{tpu_custom_call.1} parent=11 // pred_fallthru
          _
        // Predicated region
        $region25: #{tpu_custom_call.1} parent=11 // pred_check
          %p190 = pneg %p138
        $region26: #{tpu_custom_call.1} parent=11 // pred_check_branch
          %192 = sbr.rel (%p190) target = $region28
        $region27: #{tpu_custom_call.1} parent=11 // pred_region
          _
        $region28: #{tpu_custom_call.1} parent=11 // pred_fallthru
          _
      $region12: #{tpu_custom_call.1} parent=5 // pred_fallthru
        _
      %p193 = scmp.lt.s32.totalorder %s14, 2
      // Predicated region
      $region29: #{tpu_custom_call.1} parent=5 // pred_check
        %p194 = pneg %p193
      $region30: #{tpu_custom_call.1} parent=5 // pred_check_branch
        %196 = sbr.rel (%p194) target = $region32
      $region31: #{tpu_custom_call.1} parent=5 // pred_region
        // Predicated region
        $region33: #{tpu_custom_call.1} parent=31 // pred_check
          %p197 = pneg %p48
        $region34: #{tpu_custom_call.1} parent=31 // pred_check_branch
          %199 = sbr.rel (%p197) target = $region36
        $region35: #{tpu_custom_call.1} parent=31 // pred_region
          %s200 = smul.u32 2, %s22
          %p201 = scmp.lt.s32.totalorder %s21, 1
          %s202 = scalar_select %p201, %s21, 1
          %p203 = scmp.lt.s32.totalorder %s200, 1
          %s204 = scalar_select %p203, %s200, 1
          %s205 = smul.addr %s202, 2
          %s206 = sadd.s32 %s204, %s205
          %s207 = smul.addr %s206, 4
          %s208 = scalar_lea.vmem %s0, %s207
          %s209 = smul.u32 2, %s22
        $region36: #{tpu_custom_call.1} parent=31 // pred_fallthru
          _
      $region32: #{tpu_custom_call.1} parent=5 // pred_fallthru
        _
      %p210 = scmp.le.s32.totalorder 1, %s14
      %p211 = scmp.lt.s32.totalorder %s14, 3
      %p212 = pnand %p210, %p211
      %p213 = pneg %p212
      // Predicated region
      $region37: #{tpu_custom_call.1} parent=5 // pred_check
        _
      $region38: #{tpu_custom_call.1} parent=5 // pred_check_branch
        %215 = sbr.rel (%p212) target = $region40
      $region39: #{tpu_custom_call.1} parent=5 // pred_region
        %s216 = ssub.s32 %s14, 1
        %s217 = smul.u32 2, %s24
        %p218 = scmp.lt.s32.totalorder %s23, 1
        %s219 = scalar_select %p218, %s23, 1
        %p220 = scmp.lt.s32.totalorder %s217, 1
        %s221 = scalar_select %p220, %s217, 1
        %s222 = smul.addr %s219, 2
        %s223 = sadd.s32 %s221, %s222
        %s224 = smul.addr %s223, 4
        %s225 = scalar_lea.vmem %s0, %s224
        %p226 = pneg %p54
        %p227 = pneg %p51
        %p228 = pneg %p75
        %p229 = pneg %p72
        %p230 = pneg %p96
        %p231 = pneg %p93
        %p232 = pneg %p117
        %p233 = pneg %p114
        %p234 = pneg %p138
        %p235 = pneg %p135
        %p236 = pneg %p166
        %p237 = pneg %p163
        %s238 = sand.u32 %s153, 1
        %s239 = scalar_lea.sflag [#allocation3], %s238
        %s240 = sand.u32 %s153, 1
        %s241 = smul.addr %s240, 8
        %s242 = scalar_lea.vmem [#allocation2], %s241
        %s243 = smul.u32 2, %s24
        %p244 = scmp.lt.s32.totalorder %s23, 1
        %s245 = scalar_select %p244, %s23, 1
        %p246 = scmp.lt.s32.totalorder %s243, 1
        %s247 = scalar_select %p246, %s243, 1
        %s248 = smul.addr %s245, 2
        %s249 = sadd.s32 %s247, %s248
        %s250 = smul.addr %s249, 4
        %s251 = scalar_lea.vmem %s0, %s250
        %s252 = smul.u32 2, %s24
        %s253 = smul.u32 2, %s24
        %v254 = vld [vmem:[%s1] sm:$0xff]
        %v255 = vld [vmem:[%s2] sm:$0xff]
        %v256 = vld [vmem:[%s3] sm:$0xf]
        %v257 = vld [vmem:[%s4] sm:$0xf]
        %v258 = vld [vmem:[%s251] sm:$0xff]
        %260 = vset.pattern.permute.xlu0 0
        %261 = vperm.xlu0 %260, %v255
        %v262 = vpop.permute.xlu0 %261
        %v265 = vcombine.high %v258, %v258
        %vm266 = vcmask 31744
        %v268 = vsel %vm266, %v254, 0
        %vm270 = vcmask 1043456
        %v271 = vsel %vm270, %v258, 0
        %v273 = vsel %vm270, %v265, 0
        %275 = vmatprep.subr.mxu0 %v273
        %276 = vmatpush1.msra.mxu0 %v271
        %277 = vmatprep.subr.mxu0 0.0
        %278 = vmatpush1.msra.mxu0 0.0
        %279 = vmatprep.subr.mxu0 0.0
        %280 = vmatpush1.msra.mxu0 0.0
        %281 = vmatprep.subr.mxu0 0.0
        %282 = vmatpush1.msra.mxu0 0.0
        %283 = vmatprep.subr.mxu0 0.0
        %284 = vmatpush1.msra.mxu0 0.0
        %285 = vmatprep.subr.mxu0 0.0
        %286 = vmatpush1.msra.mxu0 0.0
        %287 = vmatprep.subr.mxu0 0.0
        %288 = vmatpush1.msra.mxu0 0.0
        %289 = vmatprep.subr.mxu0 0.0
        %290 = vmatpush1.msra.mxu0 0.0
        %291 = vmatprep.subr.mxu0 0.0
        %292 = vmatpush1.msra.mxu0 0.0
        %293 = vmatprep.subr.mxu0 0.0
        %294 = vmatpush1.msra.mxu0 0.0
        %295 = vmatprep.subr.mxu0 0.0
        %296 = vmatpush1.msra.mxu0 0.0
        %297 = vmatprep.subr.mxu0 0.0
        %298 = vmatpush1.msra.mxu0 0.0
        %299 = vmatprep.subr.mxu0 0.0
        %300 = vmatpush1.msra.mxu0 0.0
        %301 = vmatprep.subr.mxu0 0.0
        %302 = vmatpush1.msra.mxu0 0.0
        %303 = vmatprep.subr.mxu0 0.0
        %304 = vmatpush1.msra.mxu0 0.0
        %305 = vmatprep.subr.mxu0 0.0
        %306 = vmatpush1.msra.mxu0 0.0
        %307 = vmatprep.subr.mxu0 0.0
        %308 = vmatpush1.msra.mxu0 0.0
        %309 = vmatprep.subr.mxu0 0.0
        %310 = vmatpush1.msra.mxu0 0.0
        %311 = vmatprep.subr.mxu0 0.0
        %312 = vmatpush1.msra.mxu0 0.0
        %313 = vmatprep.subr.mxu0 0.0
        %314 = vmatpush1.msra.mxu0 0.0
        %315 = vmatprep.subr.mxu0 0.0
        %316 = vmatpush1.msra.mxu0 0.0
        %317 = vmatprep.subr.mxu0 0.0
        %318 = vmatpush1.msra.mxu0 0.0
        %319 = vmatprep.subr.mxu0 0.0
        %320 = vmatpush1.msra.mxu0 0.0
        %321 = vmatprep.subr.mxu0 0.0
        %322 = vmatpush1.msra.mxu0 0.0
        %323 = vmatprep.subr.mxu0 0.0
        %324 = vmatpush1.msra.mxu0 0.0
        %325 = vmatprep.subr.mxu0 0.0
        %326 = vmatpush1.msra.mxu0 0.0
        %327 = vmatprep.subr.mxu0 0.0
        %328 = vmatpush1.msra.mxu0 0.0
        %329 = vmatprep.subr.mxu0 0.0
        %330 = vmatpush1.msra.mxu0 0.0
        %331 = vmatprep.subr.mxu0 0.0
        %332 = vmatpush1.msra.mxu0 0.0
        %333 = vmatprep.subr.mxu0 0.0
        %334 = vmatpush1.msra.mxu0 0.0
        %335 = vmatprep.subr.mxu0 0.0
        %336 = vmatpush1.msra.mxu0 0.0
        %337 = vmatprep.subr.mxu0 0.0
        %338 = vmatpush1.msra.mxu0 0.0
        %339 = vmatprep.mubr.f32.mxu0 0.0
        %340 = vmatmul.mubr.f32.gmra.mrb[0].mxu0 %v268
        %v341 = vpop.f32.mrb[0].mxu0
        %v342 = vadd.f32 %v262, %v341
        %v343 = vpop.f32.mrb[0].mxu0
        %v344 = vadd.f32 %v262, %v343
        %345 = vdwg.mxu0
        %v346 = vmax.f32 %v342, 0.0
        %v347 = vmax.f32 %v344, 0.0
        %349 = vset.pattern.permute.xlu0 0
        %350 = vperm.xlu0 %349, %v257
        %v351 = vpop.permute.xlu0 %350
        %vm353 = vcmask 64512
        %v355 = vsel %vm353, %v256, 0
        %357 = vmatprep.subr.mxu0 %v347
        %358 = vmatpush1.msra.mxu0 %v346
        %359 = vmatprep.subr.mxu0 0.0
        %360 = vmatpush1.msra.mxu0 0.0
        %361 = vmatprep.subr.mxu0 0.0
        %362 = vmatpush1.msra.mxu0 0.0
        %363 = vmatprep.subr.mxu0 0.0
        %364 = vmatpush1.msra.mxu0 0.0
        %365 = vmatprep.subr.mxu0 0.0
        %366 = vmatpush1.msra.mxu0 0.0
        %367 = vmatprep.subr.mxu0 0.0
        %368 = vmatpush1.msra.mxu0 0.0
        %369 = vmatprep.subr.mxu0 0.0
        %370 = vmatpush1.msra.mxu0 0.0
        %371 = vmatprep.subr.mxu0 0.0
        %372 = vmatpush1.msra.mxu0 0.0
        %373 = vmatprep.subr.mxu0 0.0
        %374 = vmatpush1.msra.mxu0 0.0
        %375 = vmatprep.subr.mxu0 0.0
        %376 = vmatpush1.msra.mxu0 0.0
        %377 = vmatprep.subr.mxu0 0.0
        %378 = vmatpush1.msra.mxu0 0.0
        %379 = vmatprep.subr.mxu0 0.0
        %380 = vmatpush1.msra.mxu0 0.0
        %381 = vmatprep.subr.mxu0 0.0
        %382 = vmatpush1.msra.mxu0 0.0
        %383 = vmatprep.subr.mxu0 0.0
        %384 = vmatpush1.msra.mxu0 0.0
        %385 = vmatprep.subr.mxu0 0.0
        %386 = vmatpush1.msra.mxu0 0.0
        %387 = vmatprep.subr.mxu0 0.0
        %388 = vmatpush1.msra.mxu0 0.0
        %389 = vmatprep.subr.mxu0 0.0
        %390 = vmatpush1.msra.mxu0 0.0
        %391 = vmatprep.subr.mxu0 0.0
        %392 = vmatpush1.msra.mxu0 0.0
        %393 = vmatprep.subr.mxu0 0.0
        %394 = vmatpush1.msra.mxu0 0.0
        %395 = vmatprep.subr.mxu0 0.0
        %396 = vmatpush1.msra.mxu0 0.0
        %397 = vmatprep.subr.mxu0 0.0
        %398 = vmatpush1.msra.mxu0 0.0
        %399 = vmatprep.subr.mxu0 0.0
        %400 = vmatpush1.msra.mxu0 0.0
        %401 = vmatprep.subr.mxu0 0.0
        %402 = vmatpush1.msra.mxu0 0.0
        %403 = vmatprep.subr.mxu0 0.0
        %404 = vmatpush1.msra.mxu0 0.0
        %405 = vmatprep.subr.mxu0 0.0
        %406 = vmatpush1.msra.mxu0 0.0
        %407 = vmatprep.subr.mxu0 0.0
        %408 = vmatpush1.msra.mxu0 0.0
        %409 = vmatprep.subr.mxu0 0.0
        %410 = vmatpush1.msra.mxu0 0.0
        %411 = vmatprep.subr.mxu0 0.0
        %412 = vmatpush1.msra.mxu0 0.0
        %413 = vmatprep.subr.mxu0 0.0
        %414 = vmatpush1.msra.mxu0 0.0
        %415 = vmatprep.subr.mxu0 0.0
        %416 = vmatpush1.msra.mxu0 0.0
        %417 = vmatprep.subr.mxu0 0.0
        %418 = vmatpush1.msra.mxu0 0.0
        %419 = vmatprep.subr.mxu0 0.0
        %420 = vmatpush1.msra.mxu0 0.0
        %421 = vmatprep.mubr.f32.mxu0 0.0
        %422 = vmatmul.mubr.f32.gmra.mrb[0].mxu0 %v355
        %v423 = vpop.f32.mrb[0].mxu0
        %v424 = vadd.f32 %v351, %v423
        %v425 = vpop.f32.mrb[0].mxu0
        %v426 = vadd.f32 %v351, %v425
        %427 = vdwg.mxu0
        %v430 = vcombine.low %v424, %v426
        %432 = vst [vmem:[%s242] sm:$0xff] %v430
        %s433 = sand.u32 %s153, 1
        %s434 = scalar_lea.sflag [#allocation3], %s433
        %s435 = sand.u32 %s153, 1
        %s436 = smul.addr %s435, 8
        %s437 = scalar_lea.vmem [#allocation2], %s436
        // Predicated region
        $region41: #{tpu_custom_call.1} parent=39 // pred_check
          %p438 = pneg %p163
        $region42: #{tpu_custom_call.1} parent=39 // pred_check_branch
          %440 = sbr.rel (%p438) target = $region44
        $region43: #{tpu_custom_call.1} parent=39 // pred_region
          %s441 = smul.u32 2, %s24
          %s443 = ssub.s32 128, 128
          %444 = vsyncadd %s434, %s443
          %s445 = smul.addr %s23, 2
          %s446 = sadd.s32 %s441, %s445
          %s447 = smul.addr %s446, 64
          %s448 = scalar_lea.hbm %s5, %s447
          %s450 = sshll.u32 %s437, 4
          %s451 = int_to_ptr.vmem [resolvable:$true] %s450
          %453 = dma.vmem_to_hbm [thread:$0]  %s451, 128, %s448, %s434
        $region44: #{tpu_custom_call.1} parent=39 // pred_fallthru
          _
      $region40: #{tpu_custom_call.1} parent=5 // pred_fallthru
        _
      %p454 = scmp.le.s32.totalorder 2, %s14
      // Predicated region
      $region45: #{tpu_custom_call.1} parent=5 // pred_check
        %p455 = pneg %p454
      $region46: #{tpu_custom_call.1} parent=5 // pred_check_branch
        %457 = sbr.rel (%p455) target = $region48
      $region47: #{tpu_custom_call.1} parent=5 // pred_region
        %s458 = ssub.s32 %s14, 2
        // Predicated region
        $region49: #{tpu_custom_call.1} parent=47 // pred_check
          %p459 = pneg %p169
        $region50: #{tpu_custom_call.1} parent=47 // pred_check_branch
          %461 = sbr.rel (%p459) target = $region52
        $region51: #{tpu_custom_call.1} parent=47 // pred_region
          %s462 = sand.u32 %s154, 1
          %s463 = scalar_lea.sflag [#allocation3], %s462
          %s464 = sand.u32 %s154, 1
          %s465 = smul.addr %s464, 8
          %s466 = scalar_lea.vmem [#allocation2], %s465
          %467 = dma.done %s463, 128
        $region52: #{tpu_custom_call.1} parent=47 // pred_fallthru
          _
      $region48: #{tpu_custom_call.1} parent=5 // pred_fallthru
        _
    $region6: #{tpu_custom_call.1} parent=1 // loop_footer
      %s18 = sadd.s32 1, %s14
    $region7: #{tpu_custom_call.1} parent=1 // loop_footer_branch
      %13 = sbr.rel target = $region3
    $region8: #{tpu_custom_call.1} parent=1 // loop_exit
      _
    %468 = vsyncpa [#allocation3], 1
    %s469 = scalar_lea.sflag [#allocation3], 1
    %470 = vsyncpa %s469, 1

</llo_original>
